<compile_context>
chip_gen: v7x
topology: tpu7x:2x2x1
jax: 0.10.0
libtpu: 0.0.40
codegen_flags: <defaults>
</compile_context>

<pallas_src>
import jax
import jax.numpy as jnp
from jax import lax
from jax.experimental import pallas as pl
from jax.experimental.pallas import tpu as pltpu


def _fused_kernel(users_ref, songs_ref, tbl_ref, b1_ref, w2_ref, b2_ref, o_ref):
    # users_ref, songs_ref : [1, 1, TB] int32  (per-tile ids, batch on lanes;
    #                                           song ids pre-offset by num_users)
    # tbl_ref              : [HP, NT]  f32     (fused (embedding @ W1) table, transposed)
    # b1_ref               : [HP, 1]   f32     (fc1 bias, column)
    # w2_ref               : [HP, 1]   f32     (fc2 weight, column)
    # b2_ref               : [1, 1]    f32     (SMEM scalar)
    # o_ref                : [1, 1, TB] f32
    nt = tbl_ref.shape[1]
    tb = o_ref.shape[-1]

    u_ids = users_ref[0]                                           # [1, TB]
    s_ids = songs_ref[0]                                           # [1, TB]

    # Combined two-hot^T: entry (n, b) is 1 iff row n of the fused table is the
    # user row or the song row of sample b (disjoint index ranges by construction).
    n_iota = lax.broadcasted_iota(jnp.int32, (nt, tb), 0)
    onehot_t = ((n_iota == u_ids) | (n_iota == s_ids)).astype(jnp.float32)  # [NT, TB]

    # gather + concat + fc1 fused into a single MXU matmul -> h^T [HP, TB]
    h = jnp.dot(tbl_ref[...], onehot_t, preferred_element_type=jnp.float32)
    h = jnp.maximum(h + b1_ref[...], 0.0)                          # bias + ReLU

    # fc2: VPU multiply + XLU sublane reduce -> lane-dense [1, TB] output row.
    out = jnp.sum(h * w2_ref[...], axis=0, keepdims=True) + b2_ref[0, 0]
    o_ref[0] = out.astype(o_ref.dtype)


def music_recommendation_forward(users, songs, params, *, tile_b=None):
    """users, songs: int [B]; returns float32 [B, 1]."""
    user_table = params["user_embedding"].astype(jnp.float32)   # [NU, E]
    song_table = params["song_embedding"].astype(jnp.float32)   # [NS, E]
    w1 = params["fc1_w"].astype(jnp.float32)                    # [2E, H]
    b1 = params["fc1_b"].astype(jnp.float32)                    # [H]
    w2 = params["fc2_w"].astype(jnp.float32)                    # [H, 1]
    b2 = params["fc2_b"].astype(jnp.float32)                    # [1]

    num_users, E = user_table.shape
    num_songs = song_table.shape[0]
    H = w1.shape[1]
    B = users.shape[0]
    NT = num_users + num_songs

    # ---- fuse embedding tables with fc1 once (outside the grid), transpose so
    #      hidden sits on sublanes; zero-pad hidden 64 -> 128 (exact).
    HP = max(128, pl.cdiv(H, 128) * 128)
    fused = jnp.concatenate([user_table @ w1[:E], song_table @ w1[E:]], axis=0)   # [NT, H]
    fused_t = jnp.zeros((HP, NT), jnp.float32).at[:H, :].set(fused.T)             # [HP, NT]
    b1_col = jnp.zeros((HP, 1), jnp.float32).at[:H, 0].set(b1)
    w2_col = jnp.zeros((HP, 1), jnp.float32).at[:H, 0].set(w2[:, 0])
    b2_smem = b2.reshape(1, 1)

    # ---- batch tiling: batch maps to lanes, 128..512 samples per grid step ----
    if tile_b is None:
        tile_b = min(512, pl.cdiv(B, 128) * 128)
    tile_b = max(128, (tile_b // 128) * 128)
    n_tiles = pl.cdiv(B, tile_b)
    Bp = n_tiles * tile_b
    users_p = jnp.zeros((Bp,), jnp.int32).at[:B].set(users.astype(jnp.int32))
    songs_p = jnp.zeros((Bp,), jnp.int32).at[:B].set(
        songs.astype(jnp.int32) + num_users)       # pre-offset into combined table
    users_p = users_p.reshape(n_tiles, 1, tile_b)
    songs_p = songs_p.reshape(n_tiles, 1, tile_b)

    batch_spec = pl.BlockSpec((1, 1, tile_b), lambda i: (i, 0, 0))
    const = lambda shape: pl.BlockSpec(shape, lambda i: (0, 0))     # VMEM-resident

    out_p = pl.pallas_call(
        _fused_kernel,
        out_shape=jax.ShapeDtypeStruct((n_tiles, 1, tile_b), jnp.float32),
        grid=(n_tiles,),
        in_specs=[
            batch_spec,                                   # users
            batch_spec,                                   # songs (offset)
            const((HP, NT)),                              # fused projected tables
            const((HP, 1)),                               # fc1 bias column
            const((HP, 1)),                               # fc2 weight column
            pl.BlockSpec(memory_space=pltpu.MemorySpace.SMEM),   # fc2 bias scalar
        ],
        out_specs=batch_spec,
        compiler_params=pltpu.CompilerParams(
            dimension_semantics=("parallel",)),
    )(users_p, songs_p, fused_t, b1_col, w2_col, b2_smem)

    return out_p.reshape(Bp)[:B].reshape(B, 1)


def init_params(key, num_users, num_songs, embedding_dim=10, hidden=64):
    k1, k2, k3, k4, k5, k6 = jax.random.split(key, 6)
    # nn.Embedding default init: N(0, 1)
    user_embedding = jax.random.normal(k1, (num_users, embedding_dim), jnp.float32)
    song_embedding = jax.random.normal(k2, (num_songs, embedding_dim), jnp.float32)
    # nn.Linear default init: U(-1/sqrt(fan_in), 1/sqrt(fan_in))
    fan1 = 2 * embedding_dim
    lim1 = 1.0 / jnp.sqrt(fan1)
    fc1_w = jax.random.uniform(k3, (fan1, hidden), jnp.float32, -lim1, lim1)
    fc1_b = jax.random.uniform(k4, (hidden,), jnp.float32, -lim1, lim1)
    lim2 = 1.0 / jnp.sqrt(hidden)
    fc2_w = jax.random.uniform(k5, (hidden, 1), jnp.float32, -lim2, lim2)
    fc2_b = jax.random.uniform(k6, (1,), jnp.float32, -lim2, lim2)
    return {
        "user_embedding": user_embedding,
        "song_embedding": song_embedding,
        "fc1_w": fc1_w,
        "fc1_b": fc1_b,
        "fc2_w": fc2_w,
        "fc2_b": fc2_b,
    }


if __name__ == "__main__":
    key = jax.random.PRNGKey(0)
    num_users, num_songs, embedding_dim, batch = 32, 48, 10, 8

    pkey, ukey, skey = jax.random.split(key, 3)
    params = init_params(pkey, num_users, num_songs, embedding_dim)
    users = jax.random.randint(ukey, (batch,), 0, num_users, dtype=jnp.int32)
    songs = jax.random.randint(skey, (batch,), 0, num_songs, dtype=jnp.int32)

    out = music_recommendation_forward(users, songs, params)
    out = jax.block_until_ready(out)

    # Pure-JAX reference (same math, no Pallas).
    u_emb = jnp.take(params["user_embedding"], users, axis=0)
    s_emb = jnp.take(params["song_embedding"], songs, axis=0)
    x = jnp.concatenate([u_emb, s_emb], axis=1)
    h = jnp.maximum(x @ params["fc1_w"] + params["fc1_b"], 0.0)
    ref = h @ params["fc2_w"] + params["fc2_b"]

    assert out.shape == (batch, 1), out.shape
    assert jnp.allclose(out, ref, atol=1e-5, rtol=1e-5), (out, ref)
    print("KERNEL_OK")
</pallas_src>

<mosaic_0001>
module attributes {stable_mosaic.version = 11 : i64} {
  func.func @_fused_kernel(%arg0: i32, %arg1: memref<1x1x128xi32, #tpu.memory_space<vmem>>, %arg2: memref<1x1x128xi32, #tpu.memory_space<vmem>>, %arg3: memref<128x80xf32, #tpu.memory_space<vmem>>, %arg4: memref<128x1xf32, #tpu.memory_space<vmem>>, %arg5: memref<128x1xf32, #tpu.memory_space<vmem>>, %arg6: memref<1x1xf32, #tpu.memory_space<smem>>, %arg7: memref<1x1x128xf32, #tpu.memory_space<vmem>>) attributes {dimension_semantics = [#tpu.dimension_semantics<parallel>], iteration_bounds = array<i64: 1>, scalar_prefetch = 0 : i64, scratch_operands = 0 : i64, tpu.core_type = #tpu.core_type<tc>, window_params = [{transform_indices = @transform_0, window_bounds = array<i64: 1, 1, 128>}, {transform_indices = @transform_1, window_bounds = array<i64: 1, 1, 128>}, {pipeline_mode = #tpu.pipeline_mode<synchronous>, transform_indices = @transform_2, window_bounds = array<i64: 128, 80>}, {pipeline_mode = #tpu.pipeline_mode<synchronous>, transform_indices = @transform_3, window_bounds = array<i64: 128, 1>}, {pipeline_mode = #tpu.pipeline_mode<synchronous>, transform_indices = @transform_4, window_bounds = array<i64: 128, 1>}, {transform_indices = @transform_5, window_bounds = array<i64: 1, 1>}, {transform_indices = @transform_6, window_bounds = array<i64: 1, 1, 128>}]} {
    %c0 = arith.constant 0 : index
    %c0_0 = arith.constant 0 : index
    %c0_1 = arith.constant 0 : index
    %0 = vector.load %arg1[%c0, %c0_0, %c0_1] : memref<1x1x128xi32, #tpu.memory_space<vmem>>, vector<1x1x128xi32>
    %1 = vector.shape_cast %0 : vector<1x1x128xi32> to vector<1x128xi32>
    %c0_2 = arith.constant 0 : index
    %c0_3 = arith.constant 0 : index
    %c0_4 = arith.constant 0 : index
    %2 = vector.load %arg2[%c0_2, %c0_3, %c0_4] : memref<1x1x128xi32, #tpu.memory_space<vmem>>, vector<1x1x128xi32>
    %3 = vector.shape_cast %2 : vector<1x1x128xi32> to vector<1x128xi32>
    %4 = tpu.iota {dimensions = array<i32: 0>} : vector<80x128xi32>
    %5 = vector.broadcast %1 : vector<1x128xi32> to vector<80x128xi32>
    %6 = arith.cmpi eq, %4, %5 : vector<80x128xi32>
    %7 = vector.broadcast %3 : vector<1x128xi32> to vector<80x128xi32>
    %8 = arith.cmpi eq, %4, %7 : vector<80x128xi32>
    %9 = arith.ori %6, %8 : vector<80x128xi1>
    %10 = arith.extui %9 : vector<80x128xi1> to vector<80x128xi32>
    %11 = arith.sitofp %10 : vector<80x128xi32> to vector<80x128xf32>
    %c0_5 = arith.constant 0 : index
    %c0_6 = arith.constant 0 : index
    %12 = vector.load %arg3[%c0_5, %c0_6] : memref<128x80xf32, #tpu.memory_space<vmem>>, vector<128x80xf32>
    %cst = arith.constant dense<0.000000e+00> : vector<128x128xf32>
    %13 = tpu.matmul %12, %11, %cst {dimension_numbers = #tpu.dot_dimension_numbers<[1], [0], [0], [1], [0, 0, 1, 1], [], []>} : vector<128x80xf32>, vector<80x128xf32>, vector<128x128xf32> -> vector<128x128xf32>
    %c0_7 = arith.constant 0 : index
    %c0_8 = arith.constant 0 : index
    %14 = vector.load %arg4[%c0_7, %c0_8] : memref<128x1xf32, #tpu.memory_space<vmem>>, vector<128x1xf32>
    %15 = vector.broadcast %14 : vector<128x1xf32> to vector<128x128xf32>
    %16 = arith.addf %13, %15 : vector<128x128xf32>
    %cst_9 = arith.constant 0.000000e+00 : f32
    %17 = vector.broadcast %cst_9 : f32 to vector<128x128xf32>
    %18 = arith.maximumf %16, %17 : vector<128x128xf32>
    %c0_10 = arith.constant 0 : index
    %c0_11 = arith.constant 0 : index
    %19 = vector.load %arg5[%c0_10, %c0_11] : memref<128x1xf32, #tpu.memory_space<vmem>>, vector<128x1xf32>
    %20 = vector.broadcast %19 : vector<128x1xf32> to vector<128x128xf32>
    %21 = arith.mulf %18, %20 : vector<128x128xf32>
    %cst_12 = arith.constant dense<0.000000e+00> : vector<128xf32>
    %22 = vector.multi_reduction <add>, %21, %cst_12 [0] : vector<128x128xf32> to vector<128xf32>
    %23 = vector.shape_cast %22 : vector<128xf32> to vector<1x128xf32>
    %c0_13 = arith.constant 0 : index
    %c0_14 = arith.constant 0 : index
    %24 = memref.load %arg6[%c0_13, %c0_14] : memref<1x1xf32, #tpu.memory_space<smem>>
    %25 = vector.broadcast %24 : f32 to vector<1x128xf32>
    %26 = arith.addf %23, %25 : vector<1x128xf32>
    %c0_15 = arith.constant 0 : index
    %c0_16 = arith.constant 0 : index
    %c0_17 = arith.constant 0 : index
    %27 = vector.load %arg7[%c0_15, %c0_16, %c0_17] : memref<1x1x128xf32, #tpu.memory_space<vmem>>, vector<1x1x128xf32>
    %28 = vector.shape_cast %27 : vector<1x1x128xf32> to vector<1x128xf32>
    %29 = vector.shape_cast %26 : vector<1x128xf32> to vector<1x1x128xf32>
    tpu.vector_store %arg7[%c0_15, %c0_16, %c0_17], %29 {strides = array<i32>} : memref<1x1x128xf32, #tpu.memory_space<vmem>>, vector<1x1x128xf32>,
    return
  }
  func.func @transform_0(%arg0: i32) -> (i32, i32, i32) {
    %c0_i32 = arith.constant 0 : i32
    %c0_i32_0 = arith.constant 0 : i32
    %c0_i32_1 = arith.constant 0 : i32
    return %arg0, %c0_i32, %c0_i32_0 : i32, i32, i32
  }
  func.func @transform_1(%arg0: i32) -> (i32, i32, i32) {
    %c0_i32 = arith.constant 0 : i32
    %c0_i32_0 = arith.constant 0 : i32
    %c0_i32_1 = arith.constant 0 : i32
    return %arg0, %c0_i32, %c0_i32_0 : i32, i32, i32
  }
  func.func @transform_2(%arg0: i32) -> (i32, i32) {
    %c0_i32 = arith.constant 0 : i32
    %c0_i32_0 = arith.constant 0 : i32
    %c0_i32_1 = arith.constant 0 : i32
    return %c0_i32, %c0_i32_0 : i32, i32
  }
  func.func @transform_3(%arg0: i32) -> (i32, i32) {
    %c0_i32 = arith.constant 0 : i32
    %c0_i32_0 = arith.constant 0 : i32
    %c0_i32_1 = arith.constant 0 : i32
    return %c0_i32, %c0_i32_0 : i32, i32
  }
  func.func @transform_4(%arg0: i32) -> (i32, i32) {
    %c0_i32 = arith.constant 0 : i32
    %c0_i32_0 = arith.constant 0 : i32
    %c0_i32_1 = arith.constant 0 : i32
    return %c0_i32, %c0_i32_0 : i32, i32
  }
  func.func @transform_5(%arg0: i32) -> (i32, i32) {
    %c0_i32 = arith.constant 0 : i32
    %c0_i32_0 = arith.constant 0 : i32
    %c0_i32_1 = arith.constant 0 : i32
    return %c0_i32, %c0_i32_0 : i32, i32
  }
  func.func @transform_6(%arg0: i32) -> (i32, i32, i32) {
    %c0_i32 = arith.constant 0 : i32
    %c0_i32_0 = arith.constant 0 : i32
    %c0_i32_1 = arith.constant 0 : i32
    return %arg0, %c0_i32, %c0_i32_0 : i32, i32, i32
  }
}

</mosaic_0001>

<llo_original>
// kernel: tpu_custom_call.1
$region0: #{tpu_custom_call.1}
  #allocation0 [shape = 'u32[]', space=smem, size = 0x4, offset = 0x4, fixed_abs, tag = 'smem constant byte address 0x4 - core index']
  #allocation1 [shape = 'u32[144,128]{1,0:T(1,128)}', space=vmem, size = 0x12000, scoped, tag = 'internal scratch']
  #allocation2 [shape = 'f32[1,1]{1,0:T(1,128)S(6)}', space=smem, size = 0x200, scoped, tag = 'scoped memory for tpu_custom_call.1']
  %s0 = inlined_call_operand.vmem [shape: s32[1,1,128], index: 0, kind: input, shape index: {}]
  %s1 = inlined_call_operand.vmem [shape: s32[1,1,128], index: 1, kind: input, shape index: {}]
  %s2 = inlined_call_operand.vmem [shape: f32[128,80], index: 2, kind: input, shape index: {}]
  %s3 = inlined_call_operand.vmem [shape: f32[128,1], index: 3, kind: input, shape index: {}]
  %s4 = inlined_call_operand.vmem [shape: f32[128,1], index: 4, kind: input, shape index: {}]
  %s5 = inlined_call_operand.<no memory space> [shape: f32[1,1], index: 5, kind: input, shape index: {}]
  %s6 = inlined_call_operand.hbm [shape: f32[1,1,128], index: 6, kind: output, shape index: {}]
  %s7 = sld [smem:[#allocation0]]
  $region34: #{tpu_custom_call.1} parent=0
    _
  %s9 = ssub.s32 1, %s7
  %s10 = scalar_select 0, %s9, %s7
  %11 = sst [smem:[#allocation2]] %s5
  $region1: #{tpu_custom_call.1} parent=0
    #allocation3 [shape = 'u8[512]{0}', space=vmem, size = 0x400, scoped, tag = 'output window, operand 0, single buffered']
    #allocation4 [shape = 's32[1]{0}', space=sflag, size = 0x4, scoped, tag = 'scoped memory for tpu_custom_call.1']
    %12 = vsyncpa [#allocation4], 0
    // Predicated region
    $region2: #{tpu_custom_call.1} parent=1 // pred_check
      _
    $region3: #{tpu_custom_call.1} parent=1 // pred_check_branch
      %14 = sbr.rel (0) target = $region5
    $region4: #{tpu_custom_call.1} parent=1 // pred_region
      _
    $region5: #{tpu_custom_call.1} parent=1 // pred_fallthru
      _
    // Predicated region
    $region6: #{tpu_custom_call.1} parent=1 // pred_check
      _
    $region7: #{tpu_custom_call.1} parent=1 // pred_check_branch
      %16 = sbr.rel (0) target = $region9
    $region8: #{tpu_custom_call.1} parent=1 // pred_region
      _
    $region9: #{tpu_custom_call.1} parent=1 // pred_fallthru
      _
    // Predicated region
    $region10: #{tpu_custom_call.1} parent=1 // pred_check
      _
    $region11: #{tpu_custom_call.1} parent=1 // pred_check_branch
      %18 = sbr.rel (0) target = $region13
    $region12: #{tpu_custom_call.1} parent=1 // pred_region
      _
    $region13: #{tpu_custom_call.1} parent=1 // pred_fallthru
      _
    // Predicated region
    $region14: #{tpu_custom_call.1} parent=1 // pred_check
      _
    $region15: #{tpu_custom_call.1} parent=1 // pred_check_branch
      %20 = sbr.rel (0) target = $region17
    $region16: #{tpu_custom_call.1} parent=1 // pred_region
      _
    $region17: #{tpu_custom_call.1} parent=1 // pred_fallthru
      _
    // Predicated region
    $region18: #{tpu_custom_call.1} parent=1 // pred_check
      _
    $region19: #{tpu_custom_call.1} parent=1 // pred_check_branch
      %22 = sbr.rel (0) target = $region21
    $region20: #{tpu_custom_call.1} parent=1 // pred_region
      _
    $region21: #{tpu_custom_call.1} parent=1 // pred_fallthru
      _
    // Predicated region
    $region22: #{tpu_custom_call.1} parent=1 // pred_check
      _
    $region23: #{tpu_custom_call.1} parent=1 // pred_check_branch
      %24 = sbr.rel (0) target = $region25
    $region24: #{tpu_custom_call.1} parent=1 // pred_region
      _
    $region25: #{tpu_custom_call.1} parent=1 // pred_fallthru
      _
    %v25 = vld [vmem:[%s0] sm:$0x1]
    %v26 = vld [vmem:[%s1] sm:$0x1]
    %v27 = vlaneseq
    %v28 = vshrl.u32 %v27, 7
    %v29 = vadd.s32 %v28, 8
    %v30 = vadd.s32 %v28, 16
    %v31 = vadd.s32 %v28, 24
    %v32 = vadd.s32 %v28, 32
    %v33 = vadd.s32 %v28, 40
    %v34 = vadd.s32 %v28, 48
    %v35 = vadd.s32 %v28, 56
    %v36 = vadd.s32 %v28, 64
    %v37 = vadd.s32 %v28, 72
    %v38 = vlaneseq
    %v39 = vshrl.u32 %v38, 7
    %v40 = vsub.s32 0, %v39
    %v41 = vrot.slane %v25, %v40
    %vm42 = vcmp.eq.s32.totalorder %v28, %v41
    %vm43 = vcmp.eq.s32.totalorder %v29, %v41
    %vm44 = vcmp.eq.s32.totalorder %v30, %v41
    %vm45 = vcmp.eq.s32.totalorder %v31, %v41
    %vm46 = vcmp.eq.s32.totalorder %v32, %v41
    %vm47 = vcmp.eq.s32.totalorder %v33, %v41
    %vm48 = vcmp.eq.s32.totalorder %v34, %v41
    %vm49 = vcmp.eq.s32.totalorder %v35, %v41
    %vm50 = vcmp.eq.s32.totalorder %v36, %v41
    %vm51 = vcmp.eq.s32.totalorder %v37, %v41
    %v52 = vlaneseq
    %v53 = vshrl.u32 %v52, 7
    %v54 = vsub.s32 0, %v53
    %v55 = vrot.slane %v26, %v54
    %vm56 = vcmp.eq.s32.totalorder %v28, %v55
    %vm57 = vcmp.eq.s32.totalorder %v29, %v55
    %vm58 = vcmp.eq.s32.totalorder %v30, %v55
    %vm59 = vcmp.eq.s32.totalorder %v31, %v55
    %vm60 = vcmp.eq.s32.totalorder %v32, %v55
    %vm61 = vcmp.eq.s32.totalorder %v33, %v55
    %vm62 = vcmp.eq.s32.totalorder %v34, %v55
    %vm63 = vcmp.eq.s32.totalorder %v35, %v55
    %vm64 = vcmp.eq.s32.totalorder %v36, %v55
    %vm65 = vcmp.eq.s32.totalorder %v37, %v55
    %vm66 = vmor %vm42, %vm56
    %vm67 = vmor %vm43, %vm57
    %vm68 = vmor %vm44, %vm58
    %vm69 = vmor %vm45, %vm59
    %vm70 = vmor %vm46, %vm60
    %vm71 = vmor %vm47, %vm61
    %vm72 = vmor %vm48, %vm62
    %vm73 = vmor %vm49, %vm63
    %vm74 = vmor %vm50, %vm64
    %vm75 = vmor %vm51, %vm65
    %v76 = vsel %vm66, 1, 0
    %v77 = vsel %vm67, 1, 0
    %v78 = vsel %vm68, 1, 0
    %v79 = vsel %vm69, 1, 0
    %v80 = vsel %vm70, 1, 0
    %v81 = vsel %vm71, 1, 0
    %v82 = vsel %vm72, 1, 0
    %v83 = vsel %vm73, 1, 0
    %v84 = vsel %vm74, 1, 0
    %v85 = vsel %vm75, 1, 0
    %v86 = vcvt.s32.f32 %v76
    %v87 = vcvt.s32.f32 %v77
    %v88 = vcvt.s32.f32 %v78
    %v89 = vcvt.s32.f32 %v79
    %v90 = vcvt.s32.f32 %v80
    %v91 = vcvt.s32.f32 %v81
    %v92 = vcvt.s32.f32 %v82
    %v93 = vcvt.s32.f32 %v83
    %v94 = vcvt.s32.f32 %v84
    %v95 = vcvt.s32.f32 %v85
    %v96 = vld [vmem:[%s2] sm:$0xff]
    %v97 = vld [vmem:[%s2 + $0x8] sm:$0xff]
    %v98 = vld [vmem:[%s2 + $0x10] sm:$0xff]
    %v99 = vld [vmem:[%s2 + $0x18] sm:$0xff]
    %v100 = vld [vmem:[%s2 + $0x20] sm:$0xff]
    %v101 = vld [vmem:[%s2 + $0x28] sm:$0xff]
    %v102 = vld [vmem:[%s2 + $0x30] sm:$0xff]
    %v103 = vld [vmem:[%s2 + $0x38] sm:$0xff]
    %v104 = vld [vmem:[%s2 + $0x40] sm:$0xff]
    %v105 = vld [vmem:[%s2 + $0x48] sm:$0xff]
    %v106 = vld [vmem:[%s2 + $0x50] sm:$0xff]
    %v107 = vld [vmem:[%s2 + $0x58] sm:$0xff]
    %v108 = vld [vmem:[%s2 + $0x60] sm:$0xff]
    %v109 = vld [vmem:[%s2 + $0x68] sm:$0xff]
    %v110 = vld [vmem:[%s2 + $0x70] sm:$0xff]
    %v111 = vld [vmem:[%s2 + $0x78] sm:$0xff]
    %v112 = vld [vmem:[%s3] sm:$0xff]
    %v113 = vld [vmem:[%s3 + $0x8] sm:$0xff]
    %v114 = vld [vmem:[%s3 + $0x10] sm:$0xff]
    %v115 = vld [vmem:[%s3 + $0x18] sm:$0xff]
    %v116 = vld [vmem:[%s3 + $0x20] sm:$0xff]
    %v117 = vld [vmem:[%s3 + $0x28] sm:$0xff]
    %v118 = vld [vmem:[%s3 + $0x30] sm:$0xff]
    %v119 = vld [vmem:[%s3 + $0x38] sm:$0xff]
    %v120 = vld [vmem:[%s3 + $0x40] sm:$0xff]
    %v121 = vld [vmem:[%s3 + $0x48] sm:$0xff]
    %v122 = vld [vmem:[%s3 + $0x50] sm:$0xff]
    %v123 = vld [vmem:[%s3 + $0x58] sm:$0xff]
    %v124 = vld [vmem:[%s3 + $0x60] sm:$0xff]
    %v125 = vld [vmem:[%s3 + $0x68] sm:$0xff]
    %v126 = vld [vmem:[%s3 + $0x70] sm:$0xff]
    %v127 = vld [vmem:[%s3 + $0x78] sm:$0xff]
    %129 = vset.pattern.permute.xlu0 0
    %130 = vperm.xlu0 %129, %v112
    %v131 = vpop.permute.xlu0 %130
    %134 = vset.pattern.permute.xlu0 0
    %135 = vperm.xlu0 %134, %v113
    %v136 = vpop.permute.xlu0 %135
    %139 = vset.pattern.permute.xlu0 0
    %140 = vperm.xlu0 %139, %v114
    %v141 = vpop.permute.xlu0 %140
    %144 = vset.pattern.permute.xlu0 0
    %145 = vperm.xlu0 %144, %v115
    %v146 = vpop.permute.xlu0 %145
    %149 = vset.pattern.permute.xlu0 0
    %150 = vperm.xlu0 %149, %v116
    %v151 = vpop.permute.xlu0 %150
    %154 = vset.pattern.permute.xlu0 0
    %155 = vperm.xlu0 %154, %v117
    %v156 = vpop.permute.xlu0 %155
    %159 = vset.pattern.permute.xlu0 0
    %160 = vperm.xlu0 %159, %v118
    %v161 = vpop.permute.xlu0 %160
    %164 = vset.pattern.permute.xlu0 0
    %165 = vperm.xlu0 %164, %v119
    %v166 = vpop.permute.xlu0 %165
    %169 = vset.pattern.permute.xlu0 0
    %170 = vperm.xlu0 %169, %v120
    %v171 = vpop.permute.xlu0 %170
    %174 = vset.pattern.permute.xlu0 0
    %175 = vperm.xlu0 %174, %v121
    %v176 = vpop.permute.xlu0 %175
    %179 = vset.pattern.permute.xlu0 0
    %180 = vperm.xlu0 %179, %v122
    %v181 = vpop.permute.xlu0 %180
    %184 = vset.pattern.permute.xlu0 0
    %185 = vperm.xlu0 %184, %v123
    %v186 = vpop.permute.xlu0 %185
    %189 = vset.pattern.permute.xlu0 0
    %190 = vperm.xlu0 %189, %v124
    %v191 = vpop.permute.xlu0 %190
    %194 = vset.pattern.permute.xlu0 0
    %195 = vperm.xlu0 %194, %v125
    %v196 = vpop.permute.xlu0 %195
    %199 = vset.pattern.permute.xlu0 0
    %200 = vperm.xlu0 %199, %v126
    %v201 = vpop.permute.xlu0 %200
    %204 = vset.pattern.permute.xlu0 0
    %205 = vperm.xlu0 %204, %v127
    %v206 = vpop.permute.xlu0 %205
    %vm208 = vcmask 654336
    %v210 = vsel %vm208, %v96, 0
    %v213 = vsel %vm208, %v97, 0
    %v216 = vsel %vm208, %v98, 0
    %v219 = vsel %vm208, %v99, 0
    %v222 = vsel %vm208, %v100, 0
    %v225 = vsel %vm208, %v101, 0
    %v228 = vsel %vm208, %v102, 0
    %v231 = vsel %vm208, %v103, 0
    %v234 = vsel %vm208, %v104, 0
    %v237 = vsel %vm208, %v105, 0
    %v240 = vsel %vm208, %v106, 0
    %v243 = vsel %vm208, %v107, 0
    %v246 = vsel %vm208, %v108, 0
    %v249 = vsel %vm208, %v109, 0
    %v252 = vsel %vm208, %v110, 0
    %v255 = vsel %vm208, %v111, 0
    %257 = vmatprep.subr.mxu0 0.0
    %258 = vmatpush1.msra.mxu0 %v86
    %259 = vmatprep.subr.mxu0 0.0
    %260 = vmatpush1.msra.mxu0 %v87
    %261 = vmatprep.subr.mxu0 0.0
    %262 = vmatpush1.msra.mxu0 %v88
    %263 = vmatprep.subr.mxu0 0.0
    %264 = vmatpush1.msra.mxu0 %v89
    %265 = vmatprep.subr.mxu0 0.0
    %266 = vmatpush1.msra.mxu0 %v90
    %267 = vmatprep.subr.mxu0 0.0
    %268 = vmatpush1.msra.mxu0 %v91
    %269 = vmatprep.subr.mxu0 0.0
    %270 = vmatpush1.msra.mxu0 %v92
    %271 = vmatprep.subr.mxu0 0.0
    %272 = vmatpush1.msra.mxu0 %v93
    %273 = vmatprep.subr.mxu0 0.0
    %274 = vmatpush1.msra.mxu0 %v94
    %275 = vmatprep.subr.mxu0 0.0
    %276 = vmatpush1.msra.mxu0 %v95
    %277 = vmatprep.subr.mxu0 0.0
    %278 = vmatpush1.msra.mxu0 0.0
    %279 = vmatprep.subr.mxu0 0.0
    %280 = vmatpush1.msra.mxu0 0.0
    %281 = vmatprep.subr.mxu0 0.0
    %282 = vmatpush1.msra.mxu0 0.0
    %283 = vmatprep.subr.mxu0 0.0
    %284 = vmatpush1.msra.mxu0 0.0
    %285 = vmatprep.subr.mxu0 0.0
    %286 = vmatpush1.msra.mxu0 0.0
    %287 = vmatprep.subr.mxu0 0.0
    %288 = vmatpush1.msra.mxu0 0.0
    %289 = vmatprep.subr.mxu0 0.0
    %290 = vmatpush1.msra.mxu0 0.0
    %291 = vmatprep.subr.mxu0 0.0
    %292 = vmatpush1.msra.mxu0 0.0
    %293 = vmatprep.subr.mxu0 0.0
    %294 = vmatpush1.msra.mxu0 0.0
    %295 = vmatprep.subr.mxu0 0.0
    %296 = vmatpush1.msra.mxu0 0.0
    %297 = vmatprep.subr.mxu0 0.0
    %298 = vmatpush1.msra.mxu0 0.0
    %299 = vmatprep.subr.mxu0 0.0
    %300 = vmatpush1.msra.mxu0 0.0
    %301 = vmatprep.subr.mxu0 0.0
    %302 = vmatpush1.msra.mxu0 0.0
    %303 = vmatprep.subr.mxu0 0.0
    %304 = vmatpush1.msra.mxu0 0.0
    %305 = vmatprep.subr.mxu0 0.0
    %306 = vmatpush1.msra.mxu0 0.0
    %307 = vmatprep.subr.mxu0 0.0
    %308 = vmatpush1.msra.mxu0 0.0
    %309 = vmatprep.subr.mxu0 0.0
    %310 = vmatpush1.msra.mxu0 0.0
    %311 = vmatprep.subr.mxu0 0.0
    %312 = vmatpush1.msra.mxu0 0.0
    %313 = vmatprep.subr.mxu0 0.0
    %314 = vmatpush1.msra.mxu0 0.0
    %315 = vmatprep.subr.mxu0 0.0
    %316 = vmatpush1.msra.mxu0 0.0
    %317 = vmatprep.subr.mxu0 0.0
    %318 = vmatpush1.msra.mxu0 0.0
    %319 = vmatprep.subr.mxu0 0.0
    %320 = vmatpush1.msra.mxu0 0.0
    %321 = vmatprep.mubr.f32.mxu0 0.0
    %322 = vmatmul.mubr.f32.gmra.mrb[0].mxu0 %v210
    %v323 = vpop.f32.mrb[0].mxu0
    %v324 = vadd.f32 %v131, %v323
    %v325 = vpop.f32.mrb[0].mxu0
    %326 = vmatprep.mubr.f32.mxu0 0.0
    %327 = vmatmul.mubr.f32.gmra.mrb[0].mxu0 %v213
    %v328 = vpop.f32.mrb[0].mxu0
    %v329 = vadd.f32 %v136, %v328
    %v330 = vpop.f32.mrb[0].mxu0
    %331 = vmatprep.mubr.f32.mxu0 0.0
    %332 = vmatmul.mubr.f32.gmra.mrb[0].mxu0 %v216
    %v333 = vpop.f32.mrb[0].mxu0
    %v334 = vadd.f32 %v141, %v333
    %v335 = vpop.f32.mrb[0].mxu0
    %336 = vmatprep.mubr.f32.mxu0 0.0
    %337 = vmatmul.mubr.f32.gmra.mrb[0].mxu0 %v219
    %v338 = vpop.f32.mrb[0].mxu0
    %v339 = vadd.f32 %v146, %v338
    %v340 = vpop.f32.mrb[0].mxu0
    %341 = vmatprep.mubr.f32.mxu0 0.0
    %342 = vmatmul.mubr.f32.gmra.mrb[0].mxu0 %v222
    %v343 = vpop.f32.mrb[0].mxu0
    %v344 = vadd.f32 %v151, %v343
    %v345 = vpop.f32.mrb[0].mxu0
    %346 = vmatprep.mubr.f32.mxu0 0.0
    %347 = vmatmul.mubr.f32.gmra.mrb[0].mxu0 %v225
    %v348 = vpop.f32.mrb[0].mxu0
    %v349 = vadd.f32 %v156, %v348
    %v350 = vpop.f32.mrb[0].mxu0
    %351 = vmatprep.mubr.f32.mxu0 0.0
    %352 = vmatmul.mubr.f32.gmra.mrb[0].mxu0 %v228
    %v353 = vpop.f32.mrb[0].mxu0
    %v354 = vadd.f32 %v161, %v353
    %v355 = vpop.f32.mrb[0].mxu0
    %356 = vmatprep.mubr.f32.mxu0 0.0
    %357 = vmatmul.mubr.f32.gmra.mrb[0].mxu0 %v231
    %v358 = vpop.f32.mrb[0].mxu0
    %v359 = vadd.f32 %v166, %v358
    %v360 = vpop.f32.mrb[0].mxu0
    %361 = vmatprep.mubr.f32.mxu0 0.0
    %362 = vmatmul.mubr.f32.gmra.mrb[0].mxu0 %v234
    %v363 = vpop.f32.mrb[0].mxu0
    %v364 = vadd.f32 %v171, %v363
    %v365 = vpop.f32.mrb[0].mxu0
    %366 = vmatprep.mubr.f32.mxu0 0.0
    %367 = vmatmul.mubr.f32.gmra.mrb[0].mxu0 %v237
    %v368 = vpop.f32.mrb[0].mxu0
    %v369 = vadd.f32 %v176, %v368
    %v370 = vpop.f32.mrb[0].mxu0
    %371 = vmatprep.mubr.f32.mxu0 0.0
    %372 = vmatmul.mubr.f32.gmra.mrb[0].mxu0 %v240
    %v373 = vpop.f32.mrb[0].mxu0
    %v374 = vadd.f32 %v181, %v373
    %v375 = vpop.f32.mrb[0].mxu0
    %376 = vmatprep.mubr.f32.mxu0 0.0
    %377 = vmatmul.mubr.f32.gmra.mrb[0].mxu0 %v243
    %v378 = vpop.f32.mrb[0].mxu0
    %v379 = vadd.f32 %v186, %v378
    %v380 = vpop.f32.mrb[0].mxu0
    %381 = vmatprep.mubr.f32.mxu0 0.0
    %382 = vmatmul.mubr.f32.gmra.mrb[0].mxu0 %v246
    %v383 = vpop.f32.mrb[0].mxu0
    %v384 = vadd.f32 %v191, %v383
    %v385 = vpop.f32.mrb[0].mxu0
    %386 = vmatprep.mubr.f32.mxu0 0.0
    %387 = vmatmul.mubr.f32.gmra.mrb[0].mxu0 %v249
    %v388 = vpop.f32.mrb[0].mxu0
    %v389 = vadd.f32 %v196, %v388
    %v390 = vpop.f32.mrb[0].mxu0
    %391 = vmatprep.mubr.f32.mxu0 0.0
    %392 = vmatmul.mubr.f32.gmra.mrb[0].mxu0 %v252
    %v393 = vpop.f32.mrb[0].mxu0
    %v394 = vadd.f32 %v201, %v393
    %v395 = vpop.f32.mrb[0].mxu0
    %396 = vmatprep.mubr.f32.mxu0 0.0
    %397 = vmatmul.mubr.f32.gmra.mrb[0].mxu0 %v255
    %v398 = vpop.f32.mrb[0].mxu0
    %v399 = vadd.f32 %v206, %v398
    %v400 = vpop.f32.mrb[0].mxu0
    %401 = vdwg.mxu0
    %v402 = vmax.f32 %v324, 0.0
    %v403 = vmax.f32 %v329, 0.0
    %v404 = vmax.f32 %v334, 0.0
    %v405 = vmax.f32 %v339, 0.0
    %v406 = vmax.f32 %v344, 0.0
    %v407 = vmax.f32 %v349, 0.0
    %v408 = vmax.f32 %v354, 0.0
    %v409 = vmax.f32 %v359, 0.0
    %v410 = vmax.f32 %v364, 0.0
    %v411 = vmax.f32 %v369, 0.0
    %v412 = vmax.f32 %v374, 0.0
    %v413 = vmax.f32 %v379, 0.0
    %v414 = vmax.f32 %v384, 0.0
    %v415 = vmax.f32 %v389, 0.0
    %v416 = vmax.f32 %v394, 0.0
    %v417 = vmax.f32 %v399, 0.0
    %v418 = vld [vmem:[%s4] sm:$0xff]
    %v419 = vld [vmem:[%s4 + $0x8] sm:$0xff]
    %v420 = vld [vmem:[%s4 + $0x10] sm:$0xff]
    %v421 = vld [vmem:[%s4 + $0x18] sm:$0xff]
    %v422 = vld [vmem:[%s4 + $0x20] sm:$0xff]
    %v423 = vld [vmem:[%s4 + $0x28] sm:$0xff]
    %v424 = vld [vmem:[%s4 + $0x30] sm:$0xff]
    %v425 = vld [vmem:[%s4 + $0x38] sm:$0xff]
    %v426 = vld [vmem:[%s4 + $0x40] sm:$0xff]
    %v427 = vld [vmem:[%s4 + $0x48] sm:$0xff]
    %v428 = vld [vmem:[%s4 + $0x50] sm:$0xff]
    %v429 = vld [vmem:[%s4 + $0x58] sm:$0xff]
    %v430 = vld [vmem:[%s4 + $0x60] sm:$0xff]
    %v431 = vld [vmem:[%s4 + $0x68] sm:$0xff]
    %v432 = vld [vmem:[%s4 + $0x70] sm:$0xff]
    %v433 = vld [vmem:[%s4 + $0x78] sm:$0xff]
    %435 = vset.pattern.permute.xlu0 0
    %436 = vperm.xlu0 %435, %v418
    %v437 = vpop.permute.xlu0 %436
    %440 = vset.pattern.permute.xlu0 0
    %441 = vperm.xlu0 %440, %v419
    %v442 = vpop.permute.xlu0 %441
    %445 = vset.pattern.permute.xlu0 0
    %446 = vperm.xlu0 %445, %v420
    %v447 = vpop.permute.xlu0 %446
    %450 = vset.pattern.permute.xlu0 0
    %451 = vperm.xlu0 %450, %v421
    %v452 = vpop.permute.xlu0 %451
    %455 = vset.pattern.permute.xlu0 0
    %456 = vperm.xlu0 %455, %v422
    %v457 = vpop.permute.xlu0 %456
    %460 = vset.pattern.permute.xlu0 0
    %461 = vperm.xlu0 %460, %v423
    %v462 = vpop.permute.xlu0 %461
    %465 = vset.pattern.permute.xlu0 0
    %466 = vperm.xlu0 %465, %v424
    %v467 = vpop.permute.xlu0 %466
    %470 = vset.pattern.permute.xlu0 0
    %471 = vperm.xlu0 %470, %v425
    %v472 = vpop.permute.xlu0 %471
    %475 = vset.pattern.permute.xlu0 0
    %476 = vperm.xlu0 %475, %v426
    %v477 = vpop.permute.xlu0 %476
    %480 = vset.pattern.permute.xlu0 0
    %481 = vperm.xlu0 %480, %v427
    %v482 = vpop.permute.xlu0 %481
    %485 = vset.pattern.permute.xlu0 0
    %486 = vperm.xlu0 %485, %v428
    %v487 = vpop.permute.xlu0 %486
    %490 = vset.pattern.permute.xlu0 0
    %491 = vperm.xlu0 %490, %v429
    %v492 = vpop.permute.xlu0 %491
    %495 = vset.pattern.permute.xlu0 0
    %496 = vperm.xlu0 %495, %v430
    %v497 = vpop.permute.xlu0 %496
    %500 = vset.pattern.permute.xlu0 0
    %501 = vperm.xlu0 %500, %v431
    %v502 = vpop.permute.xlu0 %501
    %505 = vset.pattern.permute.xlu0 0
    %506 = vperm.xlu0 %505, %v432
    %v507 = vpop.permute.xlu0 %506
    %510 = vset.pattern.permute.xlu0 0
    %511 = vperm.xlu0 %510, %v433
    %v512 = vpop.permute.xlu0 %511
    %v514 = vmul.f32 %v402, %v437
    %v515 = vmul.f32 %v403, %v442
    %v516 = vmul.f32 %v404, %v447
    %v517 = vmul.f32 %v405, %v452
    %v518 = vmul.f32 %v406, %v457
    %v519 = vmul.f32 %v407, %v462
    %v520 = vmul.f32 %v408, %v467
    %v521 = vmul.f32 %v409, %v472
    %v522 = vmul.f32 %v410, %v477
    %v523 = vmul.f32 %v411, %v482
    %v524 = vmul.f32 %v412, %v487
    %v525 = vmul.f32 %v413, %v492
    %v526 = vmul.f32 %v414, %v497
    %v527 = vmul.f32 %v415, %v502
    %v528 = vmul.f32 %v416, %v507
    %v529 = vmul.f32 %v417, %v512
    %v530 = vadd.f32 %v514, %v515
    %v531 = vadd.f32 %v530, %v516
    %v532 = vadd.f32 %v531, %v517
    %v533 = vadd.f32 %v532, %v518
    %v534 = vadd.f32 %v533, %v519
    %v535 = vadd.f32 %v534, %v520
    %v536 = vadd.f32 %v535, %v521
    %v537 = vadd.f32 %v536, %v522
    %v538 = vadd.f32 %v537, %v523
    %v539 = vadd.f32 %v538, %v524
    %v540 = vadd.f32 %v539, %v525
    %v541 = vadd.f32 %v540, %v526
    %v542 = vadd.f32 %v541, %v527
    %v543 = vadd.f32 %v542, %v528
    %v544 = vadd.f32 %v543, %v529
    %v545 = vrot.slane %v544, 4
    %v546 = vadd.f32 %v544, %v545
    %v547 = vrot.slane %v546, 2
    %v548 = vadd.f32 %v546, %v547
    %v549 = vrot.slane %v548, 1
    %v550 = vadd.f32 %v548, %v549
    %s551 = sld [smem:[#allocation2]]
    %v552 = vstv %s551
    %v553 = vadd.f32 %v550, %v552
    %554 = vst [vmem:[#allocation3] sm:$0x1] %v553
    // Predicated region
    $region26: #{tpu_custom_call.1} parent=1 // pred_check
      _
    $region27: #{tpu_custom_call.1} parent=1 // pred_check_branch
      %556 = sbr.rel (0) target = $region29
    $region28: #{tpu_custom_call.1} parent=1 // pred_region
      %s558 = ssub.s32 16, 16
      %559 = vsyncadd [#allocation4], %s558
      %s561 = sshll.u32 [#allocation3], 4
      %s562 = int_to_ptr.vmem [resolvable:$true] %s561
      %564 = dma.vmem_to_hbm [thread:$0]  %s562, 16, %s6, [#allocation4]
    $region29: #{tpu_custom_call.1} parent=1 // pred_fallthru
      _
    // Predicated region
    $region30: #{tpu_custom_call.1} parent=1 // pred_check
      _
    $region31: #{tpu_custom_call.1} parent=1 // pred_check_branch
      %566 = sbr.rel (0) target = $region33
    $region32: #{tpu_custom_call.1} parent=1 // pred_region
      %567 = dma.done [#allocation4], 16
    $region33: #{tpu_custom_call.1} parent=1 // pred_fallthru
      _
    %568 = vsyncpa [#allocation4], 1

</llo_original>
